<compile_context>
chip_gen: v6e
topology: v6e:2x2x1
jax: 0.10.0
libtpu: 0.0.40
codegen_flags: <defaults>
</compile_context>

<pallas_src>
import math

import jax
import jax.numpy as jnp
from jax import lax
from jax.experimental import pallas as pl
from jax.experimental.pallas import tpu as pltpu


def _triple(v):
    return (v,) * 3 if isinstance(v, int) else tuple(v)


def _cdiv(a, b):
    return -(-a // b)


def _round_up(a, b):
    return _cdiv(a, b) * b


def _same_pads(kernel_size, stride):
    """total pad = k - s per spatial dim, extra pixel on the leading side."""
    pads = []
    for k, s in zip(kernel_size, stride):
        p = k - s
        assert p >= 0, (
            f"SamePadConv3d needs kernel_size >= stride per dim, got {k} < {s}")
        pads.append((p // 2 + p % 2, p // 2))
    return pads  # [(D_lo, D_hi), (H_lo, H_hi), (W_lo, W_hi)]


def _vmem_budget():
    """(tiling budget bytes, vmem_limit_bytes), generation-aware."""
    cap = 64 * 1024 * 1024                      # conservative (v7x) default
    try:
        cap = int(pltpu.get_tpu_info().vmem_capacity_bytes)
    except Exception:
        pass
    if cap >= 128 * 1024 * 1024:                # v5e / v6e: 128 MiB VMEM
        return 56 * 1024 * 1024, 96 * 1024 * 1024
    return 28 * 1024 * 1024, 48 * 1024 * 1024   # v7x: 64 MiB VMEM


def _choose_s_tiling(S, K, Cout, n_batch, out_bytes, budget_bytes):
    """Largest lane-dense S tile fitting the VMEM budget; S is padded to it."""
    S128 = _round_up(S, 128)

    def per_step(ts):
        return (2 * K * ts * 2               # double-buffered bf16 x tile
                + 2 * Cout * ts * out_bytes  # double-buffered output tile
                + 2 * K * Cout * 2           # weights (Pallas double-buffers too)
                + 2 * Cout * 4)              # bias

    ts = 128
    for cand in (8192, 4096, 2048, 1024, 512, 256, 128):
        if cand > S128:
            continue
        if per_step(cand) <= budget_bytes:
            ts = cand
            break
    # Megacore: with batch==1 keep >=2 S tiles so both v7x cores get work.
    while n_batch == 1 and ts > 128 and _cdiv(S, ts) < 2:
        ts //= 2
    # Cap S-padding waste at ~12.5% of the 128-rounded spatial extent.
    while ts > 128 and (_cdiv(S, ts) * ts - S128) * 8 > S128:
        ts //= 2
    return ts, _cdiv(S, ts) * ts


def _conv_gemm_kernel(x_ref, w_ref, b_ref, o_ref):
    # x_ref: (1, K, TS) bf16   w_ref: (Cout, K) bf16
    # b_ref: (Cout, 1) f32     o_ref: (1, Cout, TS) out_dtype
    acc = jnp.dot(w_ref[...], x_ref[0],
                  preferred_element_type=jnp.float32)   # one MXU matmul per tile
    o_ref[0] = (acc + b_ref[...]).astype(o_ref.dtype)   # lane-dense store over TS


def same_pad_conv3d(x, weight, bias, stride=1, out_dtype=None):
    """Forward pass of SamePadConv3d. x: (N,Cin,D,H,W) -> (N,Cout,OD,OH,OW)."""
    N, Cin, D, H, W = x.shape
    Cout, Cin_w, kD, kH, kW = weight.shape
    assert Cin == Cin_w
    sD, sH, sW = _triple(stride)
    pads = _same_pads((kD, kH, kW), (sD, sH, sW))
    out_dtype = x.dtype if out_dtype is None else out_dtype

    # --- glue: asymmetric "same" pad (matches F.pad in the module); cast to
    # bf16 *before* building the taps so the im2col slab is written once in bf16.
    xpad = jnp.pad(x.astype(jnp.bfloat16),
                   ((0, 0), (0, 0), pads[0], pads[1], pads[2]))
    Dp = D + sum(pads[0]); Hp = H + sum(pads[1]); Wp = W + sum(pads[2])
    OD = (Dp - kD) // sD + 1
    OH = (Hp - kH) // sH + 1
    OW = (Wp - kW) // sW + 1
    S = OD * OH * OW
    K3 = kD * kH * kW
    K = K3 * Cin
    K_pad = _round_up(K, 128)   # clean MXU K-tiles; zero rows/cols are inert

    budget, vmem_limit = _vmem_budget()
    out_bytes = jnp.dtype(out_dtype).itemsize
    TS, S_pad = _choose_s_tiling(S, K_pad, Cout, N, out_bytes, budget)

    # --- glue: stack the K3 strided taps along the channel axis so the whole
    # conv becomes one (K, S) slab contracted against a (Cout, K) weight.
    # TODO(synk): still a K3x activation blow-up in HBM; needs an in-kernel
    # gather over xpad (memory_space=pl.ANY) to remove.
    taps = []
    for kd in range(kD):
        for kh in range(kH):
            for kw in range(kW):
                t = xpad[:, :,
                         kd:kd + (OD - 1) * sD + 1:sD,
                         kh:kh + (OH - 1) * sH + 1:sH,
                         kw:kw + (OW - 1) * sW + 1:sW]
                taps.append(t.reshape(N, Cin, S))
    x_taps = jnp.concatenate(taps, axis=1)                  # (N, K, S) bf16
    x_taps = jnp.pad(x_taps, ((0, 0), (0, K_pad - K), (0, S_pad - S)))

    # (Cout, kD, kH, kW, Cin) -> (Cout, K_pad): matches x_taps' K order.
    w_t = jnp.transpose(weight, (0, 2, 3, 4, 1)).reshape(Cout, K)
    w_t = jnp.pad(w_t.astype(jnp.bfloat16), ((0, 0), (0, K_pad - K)))
    b2 = bias.reshape(Cout, 1).astype(jnp.float32)

    out = pl.pallas_call(
        _conv_gemm_kernel,
        out_shape=jax.ShapeDtypeStruct((N, Cout, S_pad), out_dtype),
        grid_spec=pltpu.PrefetchScalarGridSpec(
            num_scalar_prefetch=0,
            grid=(N, S_pad // TS),
            in_specs=[
                pl.BlockSpec((1, K_pad, TS), lambda n, s: (n, 0, s)),
                pl.BlockSpec((Cout, K_pad), lambda n, s: (0, 0)),  # resident weights
                pl.BlockSpec((Cout, 1), lambda n, s: (0, 0)),      # resident bias
            ],
            out_specs=pl.BlockSpec((1, Cout, TS), lambda n, s: (n, 0, s)),
        ),
        compiler_params=pltpu.CompilerParams(
            dimension_semantics=("parallel", "parallel"),
            vmem_limit_bytes=vmem_limit),
    )(x_taps, w_t, b2)

    out = out[:, :, :S]
    return out.reshape(N, Cout, OD, OH, OW)      # already NCDHW; no transpose


def init_params(key, in_channels, out_channels, kernel_size):
    """Deterministic Conv3d-style init (kaiming-uniform-like bounds)."""
    kD, kH, kW = _triple(kernel_size)
    fan_in = in_channels * kD * kH * kW
    bound = 1.0 / math.sqrt(fan_in)
    kw_key, kb_key = jax.random.split(key)
    weight = jax.random.uniform(kw_key, (out_channels, in_channels, kD, kH, kW),
                                jnp.float32, -bound, bound)
    bias = jax.random.uniform(kb_key, (out_channels,), jnp.float32, -bound, bound)
    return weight, bias


def reference_same_pad_conv3d(x, weight, bias, stride=1):
    """Pure-JAX reference (XLA conv, f32 HIGHEST) matching the PyTorch semantics."""
    kD, kH, kW = weight.shape[2:]
    sD, sH, sW = _triple(stride)
    pads = _same_pads((kD, kH, kW), (sD, sH, sW))
    out = lax.conv_general_dilated(
        x, weight, window_strides=(sD, sH, sW), padding=pads,
        dimension_numbers=("NCDHW", "OIDHW", "NCDHW"),
        precision=jax.lax.Precision.HIGHEST)
    return out + bias[None, :, None, None, None]


if __name__ == "__main__":
    key = jax.random.PRNGKey(0)
    kx, kp = jax.random.split(key)

    N, Cin, Cout = 2, 4, 8
    D = H = W = 8
    x = jax.random.normal(kx, (N, Cin, D, H, W), jnp.float32)

    conv = jax.jit(same_pad_conv3d, static_argnames=("stride", "out_dtype"))

    for kernel_size, stride in [(3, 1), (3, 2), (4, 2)]:
        weight, bias = init_params(kp, Cin, Cout, kernel_size)
        ref = reference_same_pad_conv3d(x, weight, bias, stride)

        # Default path: output in the input dtype (f32), module-parity.
        out = jax.block_until_ready(conv(x, weight, bias, stride=stride))
        assert out.shape == ref.shape, (out.shape, ref.shape)
        assert out.dtype == x.dtype
        max_err = float(jnp.max(jnp.abs(out - ref)))
        # bf16 MXU inputs with f32 accumulation -> bf16-level tolerance vs f32 ref.
        assert jnp.allclose(out, ref, atol=3e-2, rtol=3e-2), max_err

        # bf16-output fast path (halves output HBM write traffic).
        out_bf = jax.block_until_ready(
            conv(x, weight, bias, stride=stride, out_dtype=jnp.bfloat16))
        assert out_bf.shape == ref.shape and out_bf.dtype == jnp.bfloat16
        assert jnp.allclose(out_bf.astype(jnp.float32), ref, atol=6e-2, rtol=6e-2)

    print("KERNEL_OK")
</pallas_src>

<mosaic_0001>
module attributes {stable_mosaic.version = 11 : i64} {
  func.func @_conv_gemm_kernel(%arg0: i32, %arg1: i32, %arg2: memref<1x128x512xbf16, #tpu.memory_space<vmem>>, %arg3: memref<8x128xbf16, #tpu.memory_space<vmem>>, %arg4: memref<8x1xf32, #tpu.memory_space<vmem>>, %arg5: memref<1x8x512xf32, #tpu.memory_space<vmem>>) attributes {dimension_semantics = [#tpu.dimension_semantics<parallel>, #tpu.dimension_semantics<parallel>], iteration_bounds = array<i64: 2, 1>, scalar_prefetch = 0 : i64, scratch_operands = 0 : i64, tpu.core_type = #tpu.core_type<tc>, window_params = [{transform_indices = @transform_0, window_bounds = array<i64: 1, 128, 512>}, {pipeline_mode = #tpu.pipeline_mode<synchronous>, transform_indices = @transform_1, window_bounds = array<i64: 8, 128>}, {pipeline_mode = #tpu.pipeline_mode<synchronous>, transform_indices = @transform_2, window_bounds = array<i64: 8, 1>}, {transform_indices = @transform_3, window_bounds = array<i64: 1, 8, 512>}]} {
    %c0 = arith.constant 0 : index
    %c0_0 = arith.constant 0 : index
    %0 = vector.load %arg3[%c0, %c0_0] : memref<8x128xbf16, #tpu.memory_space<vmem>>, vector<8x128xbf16>
    %c0_1 = arith.constant 0 : index
    %c0_2 = arith.constant 0 : index
    %c0_3 = arith.constant 0 : index
    %1 = vector.load %arg2[%c0_1, %c0_2, %c0_3] : memref<1x128x512xbf16, #tpu.memory_space<vmem>>, vector<1x128x512xbf16>
    %2 = vector.shape_cast %1 : vector<1x128x512xbf16> to vector<128x512xbf16>
    %cst = arith.constant dense<0.000000e+00> : vector<8x512xf32>
    %3 = tpu.matmul %0, %2, %cst {dimension_numbers = #tpu.dot_dimension_numbers<[1], [0], [0], [1], [0, 0, 1, 1], [], []>} : vector<8x128xbf16>, vector<128x512xbf16>, vector<8x512xf32> -> vector<8x512xf32>
    %c0_4 = arith.constant 0 : index
    %c0_5 = arith.constant 0 : index
    %4 = vector.load %arg4[%c0_4, %c0_5] : memref<8x1xf32, #tpu.memory_space<vmem>>, vector<8x1xf32>
    %5 = vector.broadcast %4 : vector<8x1xf32> to vector<8x512xf32>
    %6 = arith.addf %3, %5 : vector<8x512xf32>
    %c0_6 = arith.constant 0 : index
    %c0_7 = arith.constant 0 : index
    %c0_8 = arith.constant 0 : index
    %7 = vector.load %arg5[%c0_6, %c0_7, %c0_8] : memref<1x8x512xf32, #tpu.memory_space<vmem>>, vector<1x8x512xf32>
    %8 = vector.shape_cast %7 : vector<1x8x512xf32> to vector<8x512xf32>
    %9 = vector.shape_cast %6 : vector<8x512xf32> to vector<1x8x512xf32>
    tpu.vector_store %arg5[%c0_6, %c0_7, %c0_8], %9 {strides = array<i32>} : memref<1x8x512xf32, #tpu.memory_space<vmem>>, vector<1x8x512xf32>,
    return
  }
  func.func @transform_0(%arg0: i32, %arg1: i32) -> (i32, i32, i32) {
    %c0_i32 = arith.constant 0 : i32
    %c0_i32_0 = arith.constant 0 : i32
    return %arg0, %c0_i32, %arg1 : i32, i32, i32
  }
  func.func @transform_1(%arg0: i32, %arg1: i32) -> (i32, i32) {
    %c0_i32 = arith.constant 0 : i32
    %c0_i32_0 = arith.constant 0 : i32
    %c0_i32_1 = arith.constant 0 : i32
    return %c0_i32, %c0_i32_0 : i32, i32
  }
  func.func @transform_2(%arg0: i32, %arg1: i32) -> (i32, i32) {
    %c0_i32 = arith.constant 0 : i32
    %c0_i32_0 = arith.constant 0 : i32
    %c0_i32_1 = arith.constant 0 : i32
    return %c0_i32, %c0_i32_0 : i32, i32
  }
  func.func @transform_3(%arg0: i32, %arg1: i32) -> (i32, i32, i32) {
    %c0_i32 = arith.constant 0 : i32
    %c0_i32_0 = arith.constant 0 : i32
    return %arg0, %c0_i32, %arg1 : i32, i32, i32
  }
}

</mosaic_0001>

<llo_original>
// kernel: same_pad_conv3d.1
$region0: #{same_pad_conv3d.1}
  #allocation0 [shape = 'u32[]', space=smem, size = 0x4, offset = 0x4, fixed_abs, tag = 'smem constant byte address 0x4 - core index']
  #allocation1 [shape = 'u32[144,128]{1,0:T(1,128)}', space=vmem, size = 0x12000, scoped, tag = 'internal scratch']
  %s0 = inlined_call_operand.vmem [shape: bf16[2,128,512], index: 0, kind: input, shape index: {}]
  %s1 = inlined_call_operand.vmem [shape: bf16[8,128], index: 1, kind: input, shape index: {}]
  %s2 = inlined_call_operand.vmem [shape: f32[8,1], index: 2, kind: input, shape index: {}]
  %s3 = inlined_call_operand.vmem [shape: f32[2,8,512], index: 3, kind: output, shape index: {}]
  %s4 = sld [smem:[#allocation0]]
  $region45: #{same_pad_conv3d.1} parent=0
    _
  %s6 = ssub.s32 1, %s4
  %s7 = scalar_select 0, %s6, %s4
  loop: start=0, step=1, limit=4
  $region2: #{same_pad_conv3d.1} parent=0 // loop_pre_header
    _
  $region3: #{same_pad_conv3d.1} parent=0 // loop_header
    %s9 = sphi 0, %s13
    %p10 = scmp.ge.s32.totalorder %s9, 4
    %s16 = sphi 0, %s28
    %s17 = sphi 0, %s24
    %s18 = sphi 0, %s16
    %s19 = sphi 0, %s17
    %s20 = sphi 0, %s18
    %s21 = sphi 0, %s19
    %s33 = sphi 0, %s35
    %s36 = sphi 0, %s33
    %s37 = sphi 0, %s36
    %s53 = sphi 0, %s37
    %s57 = sphi 0, %s57
    %s59 = sphi 0, %s57
    %s60 = sphi 0, %s59
    %s74 = sphi 0, %s60
    %s78 = sphi 0, %s78
    %s80 = sphi 0, %s78
    %s81 = sphi 0, %s80
    %s95 = sphi 0, %s81
    %s103 = sphi 0, %s105
    %s106 = sphi 0, %s103
    %s107 = sphi 0, %s106
    %s123 = sphi 0, %s107
  $region4: #{same_pad_conv3d.1} parent=0 // loop_header_branch
    %12 = sbr.rel (%p10) target = $region8
  $region5: #{same_pad_conv3d.1} parent=0 // loop_body
    %s14 = ssub.s32 %s9, 1
    %s15 = ssub.s32 %s9, 2
    %s22 = sadd.s32 1, %s17
    %p23 = scmp.ge.s32.totalorder %s22, 1
    %s24 = scalar_select %p23, 0, %s22
    %s25 = sadd.s32 1, %s16
    %s26 = scalar_select %p23, %s25, %s16
    %p27 = scmp.ge.s32.totalorder %s26, 2
    %s28 = scalar_select %p27, 0, %s26
    %s29 = ssub.s32 %s16, %s28
    %s30 = ssub.s32 %s17, %s24
    %s31 = sor.u32 %s29, %s30
    %p32 = scmp.eq.s32.totalorder %s31, 0
    %s34 = sadd.s32 %s33, 1
    %s35 = scalar_select %p32, %s33, %s34
    %p38 = pneg %p32
    %p39 = scmp.eq.s32.totalorder %s9, 1
    %p40 = por %p38, %p39
    %p41 = scmp.ne.s32.totalorder %s33, %s36
    %p42 = scmp.eq.s32.totalorder %s9, 0
    %p43 = por %p41, %p42
    %p44 = scmp.ne.s32.totalorder %s33, %s36
    %p45 = scmp.eq.s32.totalorder %s14, 1
    %p46 = por %p44, %p45
    %p47 = scmp.ne.s32.totalorder %s36, %s37
    %p48 = scmp.eq.s32.totalorder %s14, 0
    %p49 = por %p47, %p48
    %p50 = scmp.ne.s32.totalorder %s36, %s37
    %p51 = scmp.eq.s32.totalorder %s15, 1
    %p52 = por %p50, %p51
    %p54 = scmp.ne.s32.totalorder %s37, %s53
    %p55 = scmp.eq.s32.totalorder %s15, 0
    %p56 = por %p54, %p55
    %s58 = sadd.s32 %s57, 1
    %p61 = scmp.eq.s32.totalorder %s9, 1
    %p62 = scmp.ne.s32.totalorder %s57, %s59
    %p63 = scmp.eq.s32.totalorder %s9, 0
    %p64 = por %p62, %p63
    %p65 = scmp.ne.s32.totalorder %s57, %s59
    %p66 = scmp.eq.s32.totalorder %s14, 1
    %p67 = por %p65, %p66
    %p68 = scmp.ne.s32.totalorder %s59, %s60
    %p69 = scmp.eq.s32.totalorder %s14, 0
    %p70 = por %p68, %p69
    %p71 = scmp.ne.s32.totalorder %s59, %s60
    %p72 = scmp.eq.s32.totalorder %s15, 1
    %p73 = por %p71, %p72
    %p75 = scmp.ne.s32.totalorder %s60, %s74
    %p76 = scmp.eq.s32.totalorder %s15, 0
    %p77 = por %p75, %p76
    %s79 = sadd.s32 %s78, 1
    %p82 = scmp.eq.s32.totalorder %s9, 1
    %p83 = scmp.ne.s32.totalorder %s78, %s80
    %p84 = scmp.eq.s32.totalorder %s9, 0
    %p85 = por %p83, %p84
    %p86 = scmp.ne.s32.totalorder %s78, %s80
    %p87 = scmp.eq.s32.totalorder %s14, 1
    %p88 = por %p86, %p87
    %p89 = scmp.ne.s32.totalorder %s80, %s81
    %p90 = scmp.eq.s32.totalorder %s14, 0
    %p91 = por %p89, %p90
    %p92 = scmp.ne.s32.totalorder %s80, %s81
    %p93 = scmp.eq.s32.totalorder %s15, 1
    %p94 = por %p92, %p93
    %p96 = scmp.ne.s32.totalorder %s81, %s95
    %p97 = scmp.eq.s32.totalorder %s15, 0
    %p98 = por %p96, %p97
    %s99 = ssub.s32 %s16, %s28
    %s100 = ssub.s32 %s17, %s24
    %s101 = sor.u32 %s99, %s100
    %p102 = scmp.eq.s32.totalorder %s101, 0
    %s104 = sadd.s32 %s103, 1
    %s105 = scalar_select %p102, %s103, %s104
    %p108 = pneg %p102
    %p109 = scmp.eq.s32.totalorder %s9, 1
    %p110 = por %p108, %p109
    %p111 = scmp.ne.s32.totalorder %s103, %s106
    %p112 = scmp.eq.s32.totalorder %s9, 0
    %p113 = por %p111, %p112
    %p114 = scmp.ne.s32.totalorder %s103, %s106
    %p115 = scmp.eq.s32.totalorder %s14, 1
    %p116 = por %p114, %p115
    %p117 = scmp.ne.s32.totalorder %s106, %s107
    %p118 = scmp.eq.s32.totalorder %s14, 0
    %p119 = por %p117, %p118
    %p120 = scmp.ne.s32.totalorder %s106, %s107
    %p121 = scmp.eq.s32.totalorder %s15, 1
    %p122 = por %p120, %p121
    %p124 = scmp.ne.s32.totalorder %s107, %s123
    %p125 = scmp.eq.s32.totalorder %s15, 0
    %p126 = por %p124, %p125
    %p127 = scmp.le.s32.totalorder 1, %s9
    %p128 = scmp.lt.s32.totalorder %s9, 3
    %p129 = pnand %p127, %p128
    %p130 = pneg %p129
    // Predicated region
    $region9: #{same_pad_conv3d.1} parent=5 // pred_check
      _
    $region10: #{same_pad_conv3d.1} parent=5 // pred_check_branch
      %132 = sbr.rel (%p129) target = $region12
    $region11: #{same_pad_conv3d.1} parent=5 // pred_region
      %s133 = ssub.s32 %s9, 1
      // Predicated region
      $region13: #{same_pad_conv3d.1} parent=11 // pred_check
        %p134 = pneg %p70
      $region14: #{same_pad_conv3d.1} parent=11 // pred_check_branch
        %136 = sbr.rel (%p134) target = $region16
      $region15: #{same_pad_conv3d.1} parent=11 // pred_region
        _
      $region16: #{same_pad_conv3d.1} parent=11 // pred_fallthru
        _
      // Predicated region
      $region17: #{same_pad_conv3d.1} parent=11 // pred_check
        %p137 = pneg %p91
      $region18: #{same_pad_conv3d.1} parent=11 // pred_check_branch
        %139 = sbr.rel (%p137) target = $region20
      $region19: #{same_pad_conv3d.1} parent=11 // pred_region
        _
      $region20: #{same_pad_conv3d.1} parent=11 // pred_fallthru
        _
    $region12: #{same_pad_conv3d.1} parent=5 // pred_fallthru
      _
    %p140 = scmp.lt.s32.totalorder %s9, 2
    // Predicated region
    $region21: #{same_pad_conv3d.1} parent=5 // pred_check
      %p141 = pneg %p140
    $region22: #{same_pad_conv3d.1} parent=5 // pred_check_branch
      %143 = sbr.rel (%p141) target = $region24
    $region23: #{same_pad_conv3d.1} parent=5 // pred_region
      // Predicated region
      $region25: #{same_pad_conv3d.1} parent=23 // pred_check
        %p144 = pneg %p43
      $region26: #{same_pad_conv3d.1} parent=23 // pred_check_branch
        %146 = sbr.rel (%p144) target = $region28
      $region27: #{same_pad_conv3d.1} parent=23 // pred_region
        %s147 = smul.u32 4, %s17
        %p148 = scmp.lt.s32.totalorder %s16, 1
        %s149 = scalar_select %p148, %s16, 1
        %p150 = scmp.lt.s32.totalorder %s147, 3
        %s151 = scalar_select %p150, %s147, 3
        %s152 = smul.addr %s149, 64
        %s153 = sadd.s32 %s151, %s152
        %s154 = smul.addr %s153, 4
        %s155 = scalar_lea.vmem %s0, %s154
        %s156 = smul.u32 4, %s17
      $region28: #{same_pad_conv3d.1} parent=23 // pred_fallthru
        _
    $region24: #{same_pad_conv3d.1} parent=5 // pred_fallthru
      _
    %p157 = scmp.le.s32.totalorder 1, %s9
    %p158 = scmp.lt.s32.totalorder %s9, 3
    %p159 = pnand %p157, %p158
    %p160 = pneg %p159
    // Predicated region
    $region29: #{same_pad_conv3d.1} parent=5 // pred_check
      _
    $region30: #{same_pad_conv3d.1} parent=5 // pred_check_branch
      %162 = sbr.rel (%p159) target = $region32
    $region31: #{same_pad_conv3d.1} parent=5 // pred_region
      %s163 = ssub.s32 %s9, 1
      %s164 = smul.u32 4, %s19
      %p165 = scmp.lt.s32.totalorder %s18, 1
      %s166 = scalar_select %p165, %s18, 1
      %p167 = scmp.lt.s32.totalorder %s164, 3
      %s168 = scalar_select %p167, %s164, 3
      %s169 = smul.addr %s166, 64
      %s170 = sadd.s32 %s168, %s169
      %s171 = smul.addr %s170, 4
      %s172 = scalar_lea.vmem %s0, %s171
      %p173 = pneg %p49
      %p174 = pneg %p46
      %p175 = pneg %p70
      %p176 = pneg %p67
      %p177 = pneg %p91
      %p178 = pneg %p88
      %p179 = pneg %p119
      %p180 = pneg %p116
      %s181 = smul.u32 4, %s19
      %p182 = scmp.lt.s32.totalorder %s18, 1
      %s183 = scalar_select %p182, %s18, 1
      %p184 = scmp.lt.s32.totalorder %s181, 3
      %s185 = scalar_select %p184, %s181, 3
      %s186 = smul.addr %s183, 4
      %s187 = sadd.s32 %s185, %s186
      %s188 = smul.addr %s187, 8
      %s189 = scalar_lea.vmem %s3, %s188
      %s190 = smul.u32 4, %s19
      %p191 = scmp.lt.s32.totalorder %s18, 1
      %s192 = scalar_select %p191, %s18, 1
      %p193 = scmp.lt.s32.totalorder %s190, 3
      %s194 = scalar_select %p193, %s190, 3
      %s195 = smul.addr %s192, 64
      %s196 = sadd.s32 %s194, %s195
      %s197 = smul.addr %s196, 4
      %s198 = scalar_lea.vmem %s0, %s197
      %s199 = smul.u32 4, %s19
      %s200 = smul.u32 4, %s19
      %p201 = scmp.lt.s32.totalorder %s18, 1
      %s202 = scalar_select %p201, %s18, 1
      %p203 = scmp.lt.s32.totalorder %s200, 3
      %s204 = scalar_select %p203, %s200, 3
      %s205 = smul.addr %s202, 4
      %s206 = sadd.s32 %s204, %s205
      %s207 = smul.addr %s206, 8
      %s208 = scalar_lea.vmem %s3, %s207
      %s209 = smul.u32 4, %s19
      %v211 = vld [vmem:[%s1] sm:$0xf]
      %v212 = vld [vmem:[%s198] sm:$0xff]
      %v213 = vld [vmem:[%s198 + $0x8] sm:$0xff]
      %v214 = vld [vmem:[%s198 + $0x10] sm:$0xff]
      %v215 = vld [vmem:[%s198 + $0x18] sm:$0xff]
      %v216 = vld [vmem:[%s198 + $0x20] sm:$0xff]
      %v217 = vld [vmem:[%s198 + $0x28] sm:$0xff]
      %v218 = vld [vmem:[%s198 + $0x30] sm:$0xff]
      %v219 = vld [vmem:[%s198 + $0x38] sm:$0xff]
      %v220 = vld [vmem:[%s198 + $0x40] sm:$0xff]
      %v221 = vld [vmem:[%s198 + $0x48] sm:$0xff]
      %v222 = vld [vmem:[%s198 + $0x50] sm:$0xff]
      %v223 = vld [vmem:[%s198 + $0x58] sm:$0xff]
      %v224 = vld [vmem:[%s198 + $0x60] sm:$0xff]
      %v225 = vld [vmem:[%s198 + $0x68] sm:$0xff]
      %v226 = vld [vmem:[%s198 + $0x70] sm:$0xff]
      %v227 = vld [vmem:[%s198 + $0x78] sm:$0xff]
      %v228 = vld [vmem:[%s198 + $0x80] sm:$0xff]
      %v229 = vld [vmem:[%s198 + $0x88] sm:$0xff]
      %v230 = vld [vmem:[%s198 + $0x90] sm:$0xff]
      %v231 = vld [vmem:[%s198 + $0x98] sm:$0xff]
      %v232 = vld [vmem:[%s198 + $0xa0] sm:$0xff]
      %v233 = vld [vmem:[%s198 + $0xa8] sm:$0xff]
      %v234 = vld [vmem:[%s198 + $0xb0] sm:$0xff]
      %v235 = vld [vmem:[%s198 + $0xb8] sm:$0xff]
      %v236 = vld [vmem:[%s198 + $0xc0] sm:$0xff]
      %v237 = vld [vmem:[%s198 + $0xc8] sm:$0xff]
      %v238 = vld [vmem:[%s198 + $0xd0] sm:$0xff]
      %v239 = vld [vmem:[%s198 + $0xd8] sm:$0xff]
      %v240 = vld [vmem:[%s198 + $0xe0] sm:$0xff]
      %v241 = vld [vmem:[%s198 + $0xe8] sm:$0xff]
      %v242 = vld [vmem:[%s198 + $0xf0] sm:$0xff]
      %v243 = vld [vmem:[%s198 + $0xf8] sm:$0xff]
      %v244 = vld [vmem:[%s2] sm:$0xff]
      %246 = vset.pattern.permute.xlu0 0
      %247 = vperm.xlu0 %246, %v244
      %v248 = vpop.permute.xlu0 %247
      %v282 = vunpack.c.l.b16 %v212
      %v283 = vunpack.c.h.b16 %v212
      %v284 = vunpack.c.l.b16 %v213
      %v285 = vunpack.c.h.b16 %v213
      %v286 = vunpack.c.l.b16 %v214
      %v287 = vunpack.c.h.b16 %v214
      %v288 = vunpack.c.l.b16 %v215
      %v289 = vunpack.c.h.b16 %v215
      %v290 = vunpack.c.l.b16 %v216
      %v291 = vunpack.c.h.b16 %v216
      %v292 = vunpack.c.l.b16 %v217
      %v293 = vunpack.c.h.b16 %v217
      %v294 = vunpack.c.l.b16 %v218
      %v295 = vunpack.c.h.b16 %v218
      %v296 = vunpack.c.l.b16 %v219
      %v297 = vunpack.c.h.b16 %v219
      %v298 = vunpack.c.l.b16 %v220
      %v299 = vunpack.c.h.b16 %v220
      %v300 = vunpack.c.l.b16 %v221
      %v301 = vunpack.c.h.b16 %v221
      %v302 = vunpack.c.l.b16 %v222
      %v303 = vunpack.c.h.b16 %v222
      %v304 = vunpack.c.l.b16 %v223
      %v305 = vunpack.c.h.b16 %v223
      %v306 = vunpack.c.l.b16 %v224
      %v307 = vunpack.c.h.b16 %v224
      %v308 = vunpack.c.l.b16 %v225
      %v309 = vunpack.c.h.b16 %v225
      %v310 = vunpack.c.l.b16 %v226
      %v311 = vunpack.c.h.b16 %v226
      %v312 = vunpack.c.l.b16 %v227
      %v313 = vunpack.c.h.b16 %v227
      %v314 = vunpack.c.l.b16 %v228
      %v315 = vunpack.c.h.b16 %v228
      %v316 = vunpack.c.l.b16 %v229
      %v317 = vunpack.c.h.b16 %v229
      %v318 = vunpack.c.l.b16 %v230
      %v319 = vunpack.c.h.b16 %v230
      %v320 = vunpack.c.l.b16 %v231
      %v321 = vunpack.c.h.b16 %v231
      %v322 = vunpack.c.l.b16 %v232
      %v323 = vunpack.c.h.b16 %v232
      %v324 = vunpack.c.l.b16 %v233
      %v325 = vunpack.c.h.b16 %v233
      %v326 = vunpack.c.l.b16 %v234
      %v327 = vunpack.c.h.b16 %v234
      %v328 = vunpack.c.l.b16 %v235
      %v329 = vunpack.c.h.b16 %v235
      %v330 = vunpack.c.l.b16 %v236
      %v331 = vunpack.c.h.b16 %v236
      %v332 = vunpack.c.l.b16 %v237
      %v333 = vunpack.c.h.b16 %v237
      %v334 = vunpack.c.l.b16 %v238
      %v335 = vunpack.c.h.b16 %v238
      %v336 = vunpack.c.l.b16 %v239
      %v337 = vunpack.c.h.b16 %v239
      %v338 = vunpack.c.l.b16 %v240
      %v339 = vunpack.c.h.b16 %v240
      %v340 = vunpack.c.l.b16 %v241
      %v341 = vunpack.c.h.b16 %v241
      %v342 = vunpack.c.l.b16 %v242
      %v343 = vunpack.c.h.b16 %v242
      %v344 = vunpack.c.l.b16 %v243
      %v345 = vunpack.c.h.b16 %v243
      %v346 = vpack.c.b16 %v286, %v282
      %v347 = vpack.c.b16 %v287, %v283
      %v348 = vpack.c.b16 %v288, %v284
      %v349 = vpack.c.b16 %v289, %v285
      %v350 = vpack.c.b16 %v294, %v290
      %v351 = vpack.c.b16 %v295, %v291
      %v352 = vpack.c.b16 %v296, %v292
      %v353 = vpack.c.b16 %v297, %v293
      %v354 = vpack.c.b16 %v302, %v298
      %v355 = vpack.c.b16 %v303, %v299
      %v356 = vpack.c.b16 %v304, %v300
      %v357 = vpack.c.b16 %v305, %v301
      %v358 = vpack.c.b16 %v310, %v306
      %v359 = vpack.c.b16 %v311, %v307
      %v360 = vpack.c.b16 %v312, %v308
      %v361 = vpack.c.b16 %v313, %v309
      %v362 = vpack.c.b16 %v318, %v314
      %v363 = vpack.c.b16 %v319, %v315
      %v364 = vpack.c.b16 %v320, %v316
      %v365 = vpack.c.b16 %v321, %v317
      %v366 = vpack.c.b16 %v326, %v322
      %v367 = vpack.c.b16 %v327, %v323
      %v368 = vpack.c.b16 %v328, %v324
      %v369 = vpack.c.b16 %v329, %v325
      %v370 = vpack.c.b16 %v334, %v330
      %v371 = vpack.c.b16 %v335, %v331
      %v372 = vpack.c.b16 %v336, %v332
      %v373 = vpack.c.b16 %v337, %v333
      %v374 = vpack.c.b16 %v342, %v338
      %v375 = vpack.c.b16 %v343, %v339
      %v376 = vpack.c.b16 %v344, %v340
      %v377 = vpack.c.b16 %v345, %v341
      %410 = vmatprep.subr.bf16.mxu0 %v375
      %411 = vmatpush1.bf16.msra.mxu0 %v374
      %412 = vmatprep.subr.bf16.mxu0 %v371
      %413 = vmatpush1.bf16.msra.mxu0 %v370
      %414 = vmatprep.subr.bf16.mxu0 %v367
      %415 = vmatpush1.bf16.msra.mxu0 %v366
      %416 = vmatprep.subr.bf16.mxu0 %v363
      %417 = vmatpush1.bf16.msra.mxu0 %v362
      %418 = vmatprep.subr.bf16.mxu0 %v359
      %419 = vmatpush1.bf16.msra.mxu0 %v358
      %420 = vmatprep.subr.bf16.mxu0 %v355
      %421 = vmatpush1.bf16.msra.mxu0 %v354
      %422 = vmatprep.subr.bf16.mxu0 %v351
      %423 = vmatpush1.bf16.msra.mxu0 %v350
      %424 = vmatprep.subr.bf16.mxu0 %v347
      %425 = vmatpush1.bf16.msra.mxu0 %v346
      %426 = vmatprep.subr.bf16.mxu0 0
      %427 = vmatpush2.bf16.msra.mxu0 0
      %428 = vmatprep.subr.bf16.mxu0 0
      %429 = vmatpush2.bf16.msra.mxu0 0
      %430 = vmatprep.subr.bf16.mxu0 0
      %431 = vmatpush2.bf16.msra.mxu0 0
      %432 = vmatprep.subr.bf16.mxu0 0
      %433 = vmatpush2.bf16.msra.mxu0 0
      %434 = vmatprep.subr.bf16.mxu0 0
      %435 = vmatpush2.bf16.msra.mxu0 0
      %436 = vmatprep.subr.bf16.mxu0 0
      %437 = vmatpush2.bf16.msra.mxu0 0
      %438 = vmatprep.subr.bf16.mxu0 0
      %439 = vmatpush2.bf16.msra.mxu0 0
      %440 = vmatprep.subr.bf16.mxu0 0
      %441 = vmatpush2.bf16.msra.mxu0 0
      %442 = vmatprep.mubr.bf16.mxu0 0
      %443 = vmatmul.mubr.bf16.gmra.mxu0 %v211
      %v444 = vpop.f32.mrf.mxu0
      %v445 = vadd.f32 %v248, %v444
      %v446 = vpop.f32.mrf.mxu0
      %v447 = vadd.f32 %v248, %v446
      %v448 = vpop.f32.mrf.mxu0
      %v449 = vpop.f32.mrf.mxu0
      %450 = vdwg.mxu0
      %451 = vmatprep.subr.bf16.mxu0 %v377
      %452 = vmatpush1.bf16.msra.mxu0 %v376
      %453 = vmatprep.subr.bf16.mxu0 %v373
      %454 = vmatpush1.bf16.msra.mxu0 %v372
      %455 = vmatprep.subr.bf16.mxu0 %v369
      %456 = vmatpush1.bf16.msra.mxu0 %v368
      %457 = vmatprep.subr.bf16.mxu0 %v365
      %458 = vmatpush1.bf16.msra.mxu0 %v364
      %459 = vmatprep.subr.bf16.mxu0 %v361
      %460 = vmatpush1.bf16.msra.mxu0 %v360
      %461 = vmatprep.subr.bf16.mxu0 %v357
      %462 = vmatpush1.bf16.msra.mxu0 %v356
      %463 = vmatprep.subr.bf16.mxu0 %v353
      %464 = vmatpush1.bf16.msra.mxu0 %v352
      %465 = vmatprep.subr.bf16.mxu0 %v349
      %466 = vmatpush1.bf16.msra.mxu0 %v348
      %467 = vmatprep.subr.bf16.mxu0 0
      %468 = vmatpush2.bf16.msra.mxu0 0
      %469 = vmatprep.subr.bf16.mxu0 0
      %470 = vmatpush2.bf16.msra.mxu0 0
      %471 = vmatprep.subr.bf16.mxu0 0
      %472 = vmatpush2.bf16.msra.mxu0 0
      %473 = vmatprep.subr.bf16.mxu0 0
      %474 = vmatpush2.bf16.msra.mxu0 0
      %475 = vmatprep.subr.bf16.mxu0 0
      %476 = vmatpush2.bf16.msra.mxu0 0
      %477 = vmatprep.subr.bf16.mxu0 0
      %478 = vmatpush2.bf16.msra.mxu0 0
      %479 = vmatprep.subr.bf16.mxu0 0
      %480 = vmatpush2.bf16.msra.mxu0 0
      %481 = vmatprep.subr.bf16.mxu0 0
      %482 = vmatpush2.bf16.msra.mxu0 0
      %483 = vmatprep.mubr.bf16.mxu0 0
      %484 = vmatmul.mubr.bf16.gmra.mxu0 %v211
      %v485 = vpop.f32.mrf.mxu0
      %v486 = vadd.f32 %v248, %v485
      %v487 = vpop.f32.mrf.mxu0
      %v488 = vadd.f32 %v248, %v487
      %v489 = vpop.f32.mrf.mxu0
      %v490 = vpop.f32.mrf.mxu0
      %491 = vdwg.mxu0
      %492 = vst [vmem:[%s208] sm:$0xff] %v445
      %493 = vst [vmem:[%s208 + $0x8] sm:$0xff] %v447
      %494 = vst [vmem:[%s208 + $0x10] sm:$0xff] %v486
      %495 = vst [vmem:[%s208 + $0x18] sm:$0xff] %v488
      %s496 = smul.u32 4, %s19
      %p497 = scmp.lt.s32.totalorder %s18, 1
      %s498 = scalar_select %p497, %s18, 1
      %p499 = scmp.lt.s32.totalorder %s496, 3
      %s500 = scalar_select %p499, %s496, 3
      %s501 = smul.addr %s498, 4
      %s502 = sadd.s32 %s500, %s501
      %s503 = smul.addr %s502, 8
      %s504 = scalar_lea.vmem %s3, %s503
      // Predicated region
      $region33: #{same_pad_conv3d.1} parent=31 // pred_check
        %p505 = pneg %p116
      $region34: #{same_pad_conv3d.1} parent=31 // pred_check_branch
        %507 = sbr.rel (%p505) target = $region36
      $region35: #{same_pad_conv3d.1} parent=31 // pred_region
        %s508 = smul.u32 4, %s19
      $region36: #{same_pad_conv3d.1} parent=31 // pred_fallthru
        _
    $region32: #{same_pad_conv3d.1} parent=5 // pred_fallthru
      _
    %p509 = scmp.le.s32.totalorder 2, %s9
    // Predicated region
    $region37: #{same_pad_conv3d.1} parent=5 // pred_check
      %p510 = pneg %p509
    $region38: #{same_pad_conv3d.1} parent=5 // pred_check_branch
      %512 = sbr.rel (%p510) target = $region40
    $region39: #{same_pad_conv3d.1} parent=5 // pred_region
      %s513 = ssub.s32 %s9, 2
      // Predicated region
      $region41: #{same_pad_conv3d.1} parent=39 // pred_check
        %p514 = pneg %p122
      $region42: #{same_pad_conv3d.1} parent=39 // pred_check_branch
        %516 = sbr.rel (%p514) target = $region44
      $region43: #{same_pad_conv3d.1} parent=39 // pred_region
        %s517 = smul.u32 4, %s21
        %p518 = scmp.lt.s32.totalorder %s20, 1
        %s519 = scalar_select %p518, %s20, 1
        %p520 = scmp.lt.s32.totalorder %s517, 3
        %s521 = scalar_select %p520, %s517, 3
        %s522 = smul.addr %s519, 4
        %s523 = sadd.s32 %s521, %s522
        %s524 = smul.addr %s523, 8
        %s525 = scalar_lea.vmem %s3, %s524
      $region44: #{same_pad_conv3d.1} parent=39 // pred_fallthru
        _
    $region40: #{same_pad_conv3d.1} parent=5 // pred_fallthru
      _
  $region6: #{same_pad_conv3d.1} parent=0 // loop_footer
    %s13 = sadd.s32 1, %s9
  $region7: #{same_pad_conv3d.1} parent=0 // loop_footer_branch
    %8 = sbr.rel target = $region3
  $region8: #{same_pad_conv3d.1} parent=0 // loop_exit
    _

</llo_original>
